<compile_context>
chip_gen: v7x
topology: tpu7x:2x2x1
jax: 0.10.0
libtpu: 0.0.40
codegen_flags: <defaults>
</compile_context>

<pallas_src>
import jax
import jax.numpy as jnp
from jax.experimental import pallas as pl
from jax.experimental.pallas import tpu as pltpu


def _round_up(x, m):
    return ((x + m - 1) // m) * m


def gcn_kernel(adj_ref, ew_ref, x_ref, k_ref, g_ref, e_ref, w_ref, b_ref, out_ref):
    f32 = jnp.float32
    # Per-(n,t) transpose of the (H,H) edge_weight slice, done on the MXU:
    #   ew_t[b, h*H + k] = ew[b, k*H + h]        (vec(E^T) = vec(E) @ K)
    ew_t = jnp.dot(ew_ref[...], k_ref[...], preferred_element_type=f32)          # (B, H*H)
    # diag(adj @ edge_weight)[b, h] = sum_k adj[b,h,k] * ew[b,k,h]
    #   = group-sum over k of the lane-aligned product -> another MXU matmul.
    diag = jnp.dot(adj_ref[...] * ew_t, g_ref[...], preferred_element_type=f32)  # (B, H)
    # Expand diag across each node's Cout lanes and add the +1 self loop.
    scale = jnp.dot(diag, e_ref[...], preferred_element_type=f32) + 1.0          # (B, H*Cout)
    # Block-diagonal nn.Linear: support[b, h*Cout+o] = sum_c X[b,h,c]*W[c,o] + b[o]
    support = jnp.dot(x_ref[...], w_ref[...], preferred_element_type=f32) + b_ref[...]
    out_ref[...] = scale * support                                               # lane-dense store


def gcn_conv(X, adj, edge_weight, W, b, *, block_nt=None):
    """X: (N,T,H,Cin), adj/edge_weight: (N,T,H,H), W: (Cin,Cout), b: (Cout,)."""
    N, T, H, Cin = X.shape
    Cout = W.shape[1]
    # TODO(synk): for large graphs (H > 32) the H^2 x H^2 commutation matrix no
    # longer fits comfortably in VMEM; fall back to a rowsum(adj * E^T) kernel.
    assert H <= 32, "lane-dense commutation-matrix formulation targets small H"
    HH, HCin, HCout = H * H, H * Cin, H * Cout
    rows_nt = N * T

    # Free contiguous views only -- no transposes, no padding copies.
    adj_f = adj.reshape(rows_nt, HH).astype(jnp.float32)
    ew_f = edge_weight.reshape(rows_nt, HH).astype(jnp.float32)
    x_f = X.reshape(rows_nt, HCin).astype(jnp.float32)

    # Tiny constant operands (fetched into VMEM once; index_map is constant).
    jj = jnp.arange(HH)
    # Commutation matrix: (ew_f @ K)[:, h*H + k] == ew_f[:, k*H + h]
    K = (((jj[:, None] % H) * H + jj[:, None] // H) == jj[None, :]).astype(jnp.float32)
    # Group-sum over k for each h:  G[j, h] = 1  iff  j // H == h
    G = ((jj[:, None] // H) == jnp.arange(H)[None, :]).astype(jnp.float32)
    # Expand per-node diag across Cout lanes: E2[h, h*Cout + o] = 1
    E2 = (jnp.arange(H)[:, None] == (jnp.arange(HCout)[None, :] // Cout)).astype(jnp.float32)
    # Block-diagonal linear weight / tiled bias (lane-dense output layout).
    W_big = jnp.kron(jnp.eye(H, dtype=jnp.float32), W.astype(jnp.float32))       # (H*Cin, H*Cout)
    b_big = jnp.tile(b.astype(jnp.float32), H).reshape(1, HCout)

    # Block over (n,t) slices. Target ~512 slices/step (~2.2 MB HBM per step,
    # ~5 MB double-buffered VMEM); keep grid length even for v7x megacore
    # balance. Partial last block is handled by Pallas (no jnp.pad copy).
    if block_nt is None:
        target = 512
        if rows_nt <= target:
            block_nt = rows_nt
        else:
            g = pl.cdiv(rows_nt, target)
            g += g % 2                        # even number of grid steps (v7x)
            block_nt = _round_up(pl.cdiv(rows_nt, g), 8)
    grid_len = pl.cdiv(rows_nt, block_nt)

    cost = pl.CostEstimate(
        flops=2 * rows_nt * (HH * HH + HH * H + H * HCout + HCin * HCout)
        + 2 * rows_nt * HCout,
        transcendentals=0,
        bytes_accessed=4 * (rows_nt * (2 * HH + HCin + HCout)
                            + HH * HH + HH * H + H * HCout + HCin * HCout + HCout),
    )

    out_f = pl.pallas_call(
        gcn_kernel,
        out_shape=jax.ShapeDtypeStruct((rows_nt, HCout), jnp.float32),
        grid_spec=pltpu.PrefetchScalarGridSpec(
            num_scalar_prefetch=0,
            grid=(grid_len,),
            in_specs=[
                pl.BlockSpec((block_nt, HH), lambda i: (i, 0)),      # adj slices (lane-dense)
                pl.BlockSpec((block_nt, HH), lambda i: (i, 0)),      # edge_weight slices
                pl.BlockSpec((block_nt, HCin), lambda i: (i, 0)),    # X slices
                pl.BlockSpec((HH, HH), lambda i: (0, 0)),            # commutation matrix K
                pl.BlockSpec((HH, H), lambda i: (0, 0)),             # group-sum matrix G
                pl.BlockSpec((H, HCout), lambda i: (0, 0)),          # diag-expand matrix E2
                pl.BlockSpec((HCin, HCout), lambda i: (0, 0)),       # block-diagonal W
                pl.BlockSpec((1, HCout), lambda i: (0, 0)),          # tiled bias
            ],
            out_specs=pl.BlockSpec((block_nt, HCout), lambda i: (i, 0)),
        ),
        compiler_params=pltpu.CompilerParams(
            dimension_semantics=("parallel",),
            vmem_limit_bytes=32 * 1024 * 1024,
        ),
        cost_estimate=cost,
    )(adj_f, ew_f, x_f, K, G, E2, W_big, b_big)

    return out_f.reshape(N, T, H, Cout)


def gcn_conv_ref(X, adj, edge_weight, W, b):
    """Pure-JAX reference mirroring the PyTorch forward exactly."""
    adj2 = jnp.matmul(adj, edge_weight)
    H = adj2.shape[-1]
    adj3 = adj2 + jnp.eye(H, dtype=adj2.dtype)
    support = jnp.matmul(X, W) + b
    return jnp.einsum('nthh,ntho->ntho', adj3, support)


if __name__ == "__main__":
    # Small deterministic shapes consistent with the module.
    N, T, H = 2, 8, 16
    in_channels, out_channels = 4, 32

    key = jax.random.PRNGKey(0)
    k1, k2, k3, k4, k5 = jax.random.split(key, 5)

    X = jax.random.normal(k1, (N, T, H, in_channels), dtype=jnp.float32)
    adj = jax.random.normal(k2, (N, T, H, H), dtype=jnp.float32)
    edge_weight = jax.random.normal(k3, (N, T, H, H), dtype=jnp.float32)

    # Deterministic nn.Linear-style init: W stored as (in, out) = W_torch^T.
    bound = 1.0 / jnp.sqrt(jnp.float32(in_channels))
    W = jax.random.uniform(k4, (in_channels, out_channels),
                           minval=-bound, maxval=bound, dtype=jnp.float32)
    b = jax.random.uniform(k5, (out_channels,),
                           minval=-bound, maxval=bound, dtype=jnp.float32)

    out = gcn_conv(X, adj, edge_weight, W, b)
    out = jax.block_until_ready(out)

    ref = gcn_conv_ref(X, adj, edge_weight, W, b)
    assert out.shape == (N, T, H, out_channels)
    assert jnp.allclose(out, ref, atol=1e-4, rtol=1e-4), float(jnp.max(jnp.abs(out - ref)))

    print("KERNEL_OK")
</pallas_src>

<mosaic_0001>
module attributes {stable_mosaic.version = 11 : i64} {
  func.func @gcn_kernel(%arg0: i32, %arg1: memref<16x256xf32, #tpu.memory_space<vmem>>, %arg2: memref<16x256xf32, #tpu.memory_space<vmem>>, %arg3: memref<16x64xf32, #tpu.memory_space<vmem>>, %arg4: memref<256x256xf32, #tpu.memory_space<vmem>>, %arg5: memref<256x16xf32, #tpu.memory_space<vmem>>, %arg6: memref<16x512xf32, #tpu.memory_space<vmem>>, %arg7: memref<64x512xf32, #tpu.memory_space<vmem>>, %arg8: memref<1x512xf32, #tpu.memory_space<vmem>>, %arg9: memref<16x512xf32, #tpu.memory_space<vmem>>) attributes {dimension_semantics = [#tpu.dimension_semantics<parallel>], iteration_bounds = array<i64: 1>, scalar_prefetch = 0 : i64, scratch_operands = 0 : i64, tpu.core_type = #tpu.core_type<tc>, window_params = [{transform_indices = @transform_0, window_bounds = array<i64: 16, 256>}, {transform_indices = @transform_1, window_bounds = array<i64: 16, 256>}, {transform_indices = @transform_2, window_bounds = array<i64: 16, 64>}, {pipeline_mode = #tpu.pipeline_mode<synchronous>, transform_indices = @transform_3, window_bounds = array<i64: 256, 256>}, {pipeline_mode = #tpu.pipeline_mode<synchronous>, transform_indices = @transform_4, window_bounds = array<i64: 256, 16>}, {pipeline_mode = #tpu.pipeline_mode<synchronous>, transform_indices = @transform_5, window_bounds = array<i64: 16, 512>}, {pipeline_mode = #tpu.pipeline_mode<synchronous>, transform_indices = @transform_6, window_bounds = array<i64: 64, 512>}, {pipeline_mode = #tpu.pipeline_mode<synchronous>, transform_indices = @transform_7, window_bounds = array<i64: 1, 512>}, {transform_indices = @transform_8, window_bounds = array<i64: 16, 512>}]} {
    %c0 = arith.constant 0 : index
    %c0_0 = arith.constant 0 : index
    %0 = vector.load %arg2[%c0, %c0_0] : memref<16x256xf32, #tpu.memory_space<vmem>>, vector<16x256xf32>
    %c0_1 = arith.constant 0 : index
    %c0_2 = arith.constant 0 : index
    %1 = vector.load %arg4[%c0_1, %c0_2] : memref<256x256xf32, #tpu.memory_space<vmem>>, vector<256x256xf32>
    %cst = arith.constant dense<0.000000e+00> : vector<16x256xf32>
    %2 = tpu.matmul %0, %1, %cst {dimension_numbers = #tpu.dot_dimension_numbers<[1], [0], [0], [1], [0, 0, 1, 1], [], []>} : vector<16x256xf32>, vector<256x256xf32>, vector<16x256xf32> -> vector<16x256xf32>
    %c0_3 = arith.constant 0 : index
    %c0_4 = arith.constant 0 : index
    %3 = vector.load %arg1[%c0_3, %c0_4] : memref<16x256xf32, #tpu.memory_space<vmem>>, vector<16x256xf32>
    %4 = arith.mulf %3, %2 : vector<16x256xf32>
    %c0_5 = arith.constant 0 : index
    %c0_6 = arith.constant 0 : index
    %5 = vector.load %arg5[%c0_5, %c0_6] : memref<256x16xf32, #tpu.memory_space<vmem>>, vector<256x16xf32>
    %cst_7 = arith.constant dense<0.000000e+00> : vector<16x16xf32>
    %6 = tpu.matmul %4, %5, %cst_7 {dimension_numbers = #tpu.dot_dimension_numbers<[1], [0], [0], [1], [0, 0, 1, 1], [], []>} : vector<16x256xf32>, vector<256x16xf32>, vector<16x16xf32> -> vector<16x16xf32>
    %c0_8 = arith.constant 0 : index
    %c0_9 = arith.constant 0 : index
    %7 = vector.load %arg6[%c0_8, %c0_9] : memref<16x512xf32, #tpu.memory_space<vmem>>, vector<16x512xf32>
    %cst_10 = arith.constant dense<0.000000e+00> : vector<16x512xf32>
    %8 = tpu.matmul %6, %7, %cst_10 {dimension_numbers = #tpu.dot_dimension_numbers<[1], [0], [0], [1], [0, 0, 1, 1], [], []>} : vector<16x16xf32>, vector<16x512xf32>, vector<16x512xf32> -> vector<16x512xf32>
    %cst_11 = arith.constant 1.000000e+00 : f32
    %9 = vector.broadcast %cst_11 : f32 to vector<16x512xf32>
    %10 = arith.addf %8, %9 : vector<16x512xf32>
    %c0_12 = arith.constant 0 : index
    %c0_13 = arith.constant 0 : index
    %11 = vector.load %arg3[%c0_12, %c0_13] : memref<16x64xf32, #tpu.memory_space<vmem>>, vector<16x64xf32>
    %c0_14 = arith.constant 0 : index
    %c0_15 = arith.constant 0 : index
    %12 = vector.load %arg7[%c0_14, %c0_15] : memref<64x512xf32, #tpu.memory_space<vmem>>, vector<64x512xf32>
    %cst_16 = arith.constant dense<0.000000e+00> : vector<16x512xf32>
    %13 = tpu.matmul %11, %12, %cst_16 {dimension_numbers = #tpu.dot_dimension_numbers<[1], [0], [0], [1], [0, 0, 1, 1], [], []>} : vector<16x64xf32>, vector<64x512xf32>, vector<16x512xf32> -> vector<16x512xf32>
    %c0_17 = arith.constant 0 : index
    %c0_18 = arith.constant 0 : index
    %14 = vector.load %arg8[%c0_17, %c0_18] : memref<1x512xf32, #tpu.memory_space<vmem>>, vector<1x512xf32>
    %15 = vector.broadcast %14 : vector<1x512xf32> to vector<16x512xf32>
    %16 = arith.addf %13, %15 : vector<16x512xf32>
    %17 = arith.mulf %10, %16 : vector<16x512xf32>
    %c0_19 = arith.constant 0 : index
    %c0_20 = arith.constant 0 : index
    %18 = vector.load %arg9[%c0_19, %c0_20] : memref<16x512xf32, #tpu.memory_space<vmem>>, vector<16x512xf32>
    tpu.vector_store %arg9[%c0_19, %c0_20], %17 {strides = array<i32>} : memref<16x512xf32, #tpu.memory_space<vmem>>, vector<16x512xf32>,
    return
  }
  func.func @transform_0(%arg0: i32) -> (i32, i32) {
    %c0_i32 = arith.constant 0 : i32
    %c0_i32_0 = arith.constant 0 : i32
    return %arg0, %c0_i32 : i32, i32
  }
  func.func @transform_1(%arg0: i32) -> (i32, i32) {
    %c0_i32 = arith.constant 0 : i32
    %c0_i32_0 = arith.constant 0 : i32
    return %arg0, %c0_i32 : i32, i32
  }
  func.func @transform_2(%arg0: i32) -> (i32, i32) {
    %c0_i32 = arith.constant 0 : i32
    %c0_i32_0 = arith.constant 0 : i32
    return %arg0, %c0_i32 : i32, i32
  }
  func.func @transform_3(%arg0: i32) -> (i32, i32) {
    %c0_i32 = arith.constant 0 : i32
    %c0_i32_0 = arith.constant 0 : i32
    %c0_i32_1 = arith.constant 0 : i32
    return %c0_i32, %c0_i32_0 : i32, i32
  }
  func.func @transform_4(%arg0: i32) -> (i32, i32) {
    %c0_i32 = arith.constant 0 : i32
    %c0_i32_0 = arith.constant 0 : i32
    %c0_i32_1 = arith.constant 0 : i32
    return %c0_i32, %c0_i32_0 : i32, i32
  }
  func.func @transform_5(%arg0: i32) -> (i32, i32) {
    %c0_i32 = arith.constant 0 : i32
    %c0_i32_0 = arith.constant 0 : i32
    %c0_i32_1 = arith.constant 0 : i32
    return %c0_i32, %c0_i32_0 : i32, i32
  }
  func.func @transform_6(%arg0: i32) -> (i32, i32) {
    %c0_i32 = arith.constant 0 : i32
    %c0_i32_0 = arith.constant 0 : i32
    %c0_i32_1 = arith.constant 0 : i32
    return %c0_i32, %c0_i32_0 : i32, i32
  }
  func.func @transform_7(%arg0: i32) -> (i32, i32) {
    %c0_i32 = arith.constant 0 : i32
    %c0_i32_0 = arith.constant 0 : i32
    %c0_i32_1 = arith.constant 0 : i32
    return %c0_i32, %c0_i32_0 : i32, i32
  }
  func.func @transform_8(%arg0: i32) -> (i32, i32) {
    %c0_i32 = arith.constant 0 : i32
    %c0_i32_0 = arith.constant 0 : i32
    return %arg0, %c0_i32 : i32, i32
  }
}

</mosaic_0001>

<llo_original>
// kernel: tpu_custom_call.1
$region0: #{tpu_custom_call.1}
  #allocation0 [shape = 'u32[]', space=smem, size = 0x4, offset = 0x4, fixed_abs, tag = 'smem constant byte address 0x4 - core index']
  #allocation1 [shape = 'u32[144,128]{1,0:T(1,128)}', space=vmem, size = 0x12000, scoped, tag = 'internal scratch']
  %s0 = inlined_call_operand.vmem [shape: f32[16,256], index: 0, kind: input, shape index: {}]
  %s1 = inlined_call_operand.hbm [shape: f32[16,256], index: 1, kind: input, shape index: {}]
  %s2 = inlined_call_operand.vmem [shape: f32[16,64], index: 2, kind: input, shape index: {}]
  %s3 = inlined_call_operand.hbm [shape: f32[256,256], index: 3, kind: input, shape index: {}]
  %s4 = inlined_call_operand.vmem [shape: f32[256,16], index: 4, kind: input, shape index: {}]
  %s5 = inlined_call_operand.hbm [shape: f32[16,512], index: 5, kind: input, shape index: {}]
  %s6 = inlined_call_operand.vmem [shape: f32[64,512], index: 6, kind: input, shape index: {}]
  %s7 = inlined_call_operand.vmem [shape: f32[1,512], index: 7, kind: input, shape index: {}]
  %s8 = inlined_call_operand.hbm [shape: f32[16,512], index: 8, kind: output, shape index: {}]
  %s9 = sld [smem:[#allocation0]]
  $region54: #{tpu_custom_call.1} parent=0
    _
  %s11 = ssub.s32 1, %s9
  %s12 = scalar_select 0, %s11, %s9
  $region1: #{tpu_custom_call.1} parent=0
    #allocation2 [shape = 'u8[16384]{0}', space=vmem, size = 0x4000, scoped, tag = 'input window, operand 1, single buffered']
    #allocation3 [shape = 's32[1]{0}', space=sflag, size = 0x4, scoped, tag = 'scoped memory for tpu_custom_call.1']
    #allocation4 [shape = 's32[1]{0}', space=sflag, size = 0x4, scoped, tag = 'scoped memory for tpu_custom_call.1']
    #allocation5 [shape = 'u8[262144]{0}', space=vmem, size = 0x40000, scoped, tag = 'input window, operand 3, single buffered']
    #allocation6 [shape = 's32[1]{0}', space=sflag, size = 0x4, scoped, tag = 'scoped memory for tpu_custom_call.1']
    #allocation7 [shape = 'u8[32768]{0}', space=vmem, size = 0x8000, scoped, tag = 'input window, operand 5, single buffered']
    #allocation8 [shape = 'u8[32768]{0}', space=vmem, size = 0x8000, scoped, tag = 'output window, operand 0, single buffered']
    %13 = vsyncpa [#allocation3], 0
    %14 = vsyncpa [#allocation6], 0
    %15 = vsyncpa [#allocation4], 0
    // Predicated region
    $region2: #{tpu_custom_call.1} parent=1 // pred_check
      _
    $region3: #{tpu_custom_call.1} parent=1 // pred_check_branch
      %17 = sbr.rel (0) target = $region5
    $region4: #{tpu_custom_call.1} parent=1 // pred_region
      _
    $region5: #{tpu_custom_call.1} parent=1 // pred_fallthru
      _
    // Predicated region
    $region6: #{tpu_custom_call.1} parent=1 // pred_check
      _
    $region7: #{tpu_custom_call.1} parent=1 // pred_check_branch
      %19 = sbr.rel (0) target = $region9
    $region8: #{tpu_custom_call.1} parent=1 // pred_region
      %s21 = ssub.s32 512, 512
      %22 = vsyncadd [#allocation3], %s21
      %s23 = sshll.u32 [#allocation2], 4
      %s24 = int_to_ptr.vmem [resolvable:$true] %s23
      %29 = dma.hbm_to_vmem [thread:$0]  %s1, 512, %s24, [#allocation3], 256, 256, 16
    $region9: #{tpu_custom_call.1} parent=1 // pred_fallthru
      _
    // Predicated region
    $region10: #{tpu_custom_call.1} parent=1 // pred_check
      _
    $region11: #{tpu_custom_call.1} parent=1 // pred_check_branch
      %31 = sbr.rel (0) target = $region13
    $region12: #{tpu_custom_call.1} parent=1 // pred_region
      _
    $region13: #{tpu_custom_call.1} parent=1 // pred_fallthru
      _
    // Predicated region
    $region14: #{tpu_custom_call.1} parent=1 // pred_check
      _
    $region15: #{tpu_custom_call.1} parent=1 // pred_check_branch
      %33 = sbr.rel (0) target = $region17
    $region16: #{tpu_custom_call.1} parent=1 // pred_region
      %s35 = ssub.s32 8192, 8192
      %36 = vsyncadd [#allocation6], %s35
      %s37 = sshll.u32 [#allocation5], 4
      %s38 = int_to_ptr.vmem [resolvable:$true] %s37
      %43 = dma.hbm_to_vmem [thread:$0]  %s3, 8192, %s38, [#allocation6], 256, 256, 16
    $region17: #{tpu_custom_call.1} parent=1 // pred_fallthru
      _
    // Predicated region
    $region18: #{tpu_custom_call.1} parent=1 // pred_check
      _
    $region19: #{tpu_custom_call.1} parent=1 // pred_check_branch
      %45 = sbr.rel (0) target = $region21
    $region20: #{tpu_custom_call.1} parent=1 // pred_region
      _
    $region21: #{tpu_custom_call.1} parent=1 // pred_fallthru
      _
    // Predicated region
    $region22: #{tpu_custom_call.1} parent=1 // pred_check
      _
    $region23: #{tpu_custom_call.1} parent=1 // pred_check_branch
      %47 = sbr.rel (0) target = $region25
    $region24: #{tpu_custom_call.1} parent=1 // pred_region
      %s49 = ssub.s32 1024, 1024
      %50 = vsyncadd [#allocation6], %s49
      %s51 = sshll.u32 [#allocation7], 4
      %s52 = int_to_ptr.vmem [resolvable:$true] %s51
      %57 = dma.hbm_to_vmem [thread:$0]  %s5, 1024, %s52, [#allocation6], 512, 512, 32
    $region25: #{tpu_custom_call.1} parent=1 // pred_fallthru
      _
    // Predicated region
    $region26: #{tpu_custom_call.1} parent=1 // pred_check
      _
    $region27: #{tpu_custom_call.1} parent=1 // pred_check_branch
      %59 = sbr.rel (0) target = $region29
    $region28: #{tpu_custom_call.1} parent=1 // pred_region
      _
    $region29: #{tpu_custom_call.1} parent=1 // pred_fallthru
      _
    // Predicated region
    $region30: #{tpu_custom_call.1} parent=1 // pred_check
      _
    $region31: #{tpu_custom_call.1} parent=1 // pred_check_branch
      %61 = sbr.rel (0) target = $region33
    $region32: #{tpu_custom_call.1} parent=1 // pred_region
      _
    $region33: #{tpu_custom_call.1} parent=1 // pred_fallthru
      _
    // Predicated region
    $region34: #{tpu_custom_call.1} parent=1 // pred_check
      _
    $region35: #{tpu_custom_call.1} parent=1 // pred_check_branch
      %63 = sbr.rel (0) target = $region37
    $region36: #{tpu_custom_call.1} parent=1 // pred_region
      %64 = dma.done [#allocation3], 512
    $region37: #{tpu_custom_call.1} parent=1 // pred_fallthru
      _
    // Predicated region
    $region38: #{tpu_custom_call.1} parent=1 // pred_check
      _
    $region39: #{tpu_custom_call.1} parent=1 // pred_check_branch
      %66 = sbr.rel (0) target = $region41
    $region40: #{tpu_custom_call.1} parent=1 // pred_region
      %67 = dma.done [#allocation6], 8192
    $region41: #{tpu_custom_call.1} parent=1 // pred_fallthru
      _
    // Predicated region
    $region42: #{tpu_custom_call.1} parent=1 // pred_check
      _
    $region43: #{tpu_custom_call.1} parent=1 // pred_check_branch
      %69 = sbr.rel (0) target = $region45
    $region44: #{tpu_custom_call.1} parent=1 // pred_region
      %70 = dma.done [#allocation6], 1024
    $region45: #{tpu_custom_call.1} parent=1 // pred_fallthru
      _
    %v71 = vld [vmem:[#allocation2] sm:$0xff]
    %v72 = vld [vmem:[#allocation2 + $0x8] sm:$0xff]
    %v73 = vld [vmem:[#allocation2 + $0x10] sm:$0xff]
    %v74 = vld [vmem:[#allocation2 + $0x18] sm:$0xff]
    %v75 = vld [vmem:[#allocation5] sm:$0xff]
    %v76 = vld [vmem:[#allocation5 + $0x8] sm:$0xff]
    %v77 = vld [vmem:[#allocation5 + $0x10] sm:$0xff]
    %v78 = vld [vmem:[#allocation5 + $0x18] sm:$0xff]
    %v79 = vld [vmem:[#allocation5 + $0x20] sm:$0xff]
    %v80 = vld [vmem:[#allocation5 + $0x28] sm:$0xff]
    %v81 = vld [vmem:[#allocation5 + $0x30] sm:$0xff]
    %v82 = vld [vmem:[#allocation5 + $0x38] sm:$0xff]
    %v83 = vld [vmem:[#allocation5 + $0x40] sm:$0xff]
    %v84 = vld [vmem:[#allocation5 + $0x48] sm:$0xff]
    %v85 = vld [vmem:[#allocation5 + $0x50] sm:$0xff]
    %v86 = vld [vmem:[#allocation5 + $0x58] sm:$0xff]
    %v87 = vld [vmem:[#allocation5 + $0x60] sm:$0xff]
    %v88 = vld [vmem:[#allocation5 + $0x68] sm:$0xff]
    %v89 = vld [vmem:[#allocation5 + $0x70] sm:$0xff]
    %v90 = vld [vmem:[#allocation5 + $0x78] sm:$0xff]
    %v91 = vld [vmem:[#allocation5 + $0x80] sm:$0xff]
    %v92 = vld [vmem:[#allocation5 + $0x88] sm:$0xff]
    %v93 = vld [vmem:[#allocation5 + $0x90] sm:$0xff]
    %v94 = vld [vmem:[#allocation5 + $0x98] sm:$0xff]
    %v95 = vld [vmem:[#allocation5 + $0xa0] sm:$0xff]
    %v96 = vld [vmem:[#allocation5 + $0xa8] sm:$0xff]
    %v97 = vld [vmem:[#allocation5 + $0xb0] sm:$0xff]
    %v98 = vld [vmem:[#allocation5 + $0xb8] sm:$0xff]
    %v99 = vld [vmem:[#allocation5 + $0xc0] sm:$0xff]
    %v100 = vld [vmem:[#allocation5 + $0xc8] sm:$0xff]
    %v101 = vld [vmem:[#allocation5 + $0xd0] sm:$0xff]
    %v102 = vld [vmem:[#allocation5 + $0xd8] sm:$0xff]
    %v103 = vld [vmem:[#allocation5 + $0xe0] sm:$0xff]
    %v104 = vld [vmem:[#allocation5 + $0xe8] sm:$0xff]
    %v105 = vld [vmem:[#allocation5 + $0xf0] sm:$0xff]
    %v106 = vld [vmem:[#allocation5 + $0xf8] sm:$0xff]
    %v107 = vld [vmem:[#allocation5 + $0x100] sm:$0xff]
    %v108 = vld [vmem:[#allocation5 + $0x108] sm:$0xff]
    %v109 = vld [vmem:[#allocation5 + $0x110] sm:$0xff]
    %v110 = vld [vmem:[#allocation5 + $0x118] sm:$0xff]
    %v111 = vld [vmem:[#allocation5 + $0x120] sm:$0xff]
    %v112 = vld [vmem:[#allocation5 + $0x128] sm:$0xff]
    %v113 = vld [vmem:[#allocation5 + $0x130] sm:$0xff]
    %v114 = vld [vmem:[#allocation5 + $0x138] sm:$0xff]
    %v115 = vld [vmem:[#allocation5 + $0x140] sm:$0xff]
    %v116 = vld [vmem:[#allocation5 + $0x148] sm:$0xff]
    %v117 = vld [vmem:[#allocation5 + $0x150] sm:$0xff]
    %v118 = vld [vmem:[#allocation5 + $0x158] sm:$0xff]
    %v119 = vld [vmem:[#allocation5 + $0x160] sm:$0xff]
    %v120 = vld [vmem:[#allocation5 + $0x168] sm:$0xff]
    %v121 = vld [vmem:[#allocation5 + $0x170] sm:$0xff]
    %v122 = vld [vmem:[#allocation5 + $0x178] sm:$0xff]
    %v123 = vld [vmem:[#allocation5 + $0x180] sm:$0xff]
    %v124 = vld [vmem:[#allocation5 + $0x188] sm:$0xff]
    %v125 = vld [vmem:[#allocation5 + $0x190] sm:$0xff]
    %v126 = vld [vmem:[#allocation5 + $0x198] sm:$0xff]
    %v127 = vld [vmem:[#allocation5 + $0x1a0] sm:$0xff]
    %v128 = vld [vmem:[#allocation5 + $0x1a8] sm:$0xff]
    %v129 = vld [vmem:[#allocation5 + $0x1b0] sm:$0xff]
    %v130 = vld [vmem:[#allocation5 + $0x1b8] sm:$0xff]
    %v131 = vld [vmem:[#allocation5 + $0x1c0] sm:$0xff]
    %v132 = vld [vmem:[#allocation5 + $0x1c8] sm:$0xff]
    %v133 = vld [vmem:[#allocation5 + $0x1d0] sm:$0xff]
    %v134 = vld [vmem:[#allocation5 + $0x1d8] sm:$0xff]
    %v135 = vld [vmem:[#allocation5 + $0x1e0] sm:$0xff]
    %v136 = vld [vmem:[#allocation5 + $0x1e8] sm:$0xff]
    %v137 = vld [vmem:[#allocation5 + $0x1f0] sm:$0xff]
    %v138 = vld [vmem:[#allocation5 + $0x1f8] sm:$0xff]
    %139 = vmatprep.subr.mxu0 %v76
    %140 = vmatpush1.msra.mxu0 %v75
    %141 = vmatprep.subr.mxu0 %v78
    %142 = vmatpush1.msra.mxu0 %v77
    %143 = vmatprep.subr.mxu0 %v80
    %144 = vmatpush1.msra.mxu0 %v79
    %145 = vmatprep.subr.mxu0 %v82
    %146 = vmatpush1.msra.mxu0 %v81
    %147 = vmatprep.subr.mxu0 %v84
    %148 = vmatpush1.msra.mxu0 %v83
    %149 = vmatprep.subr.mxu0 %v86
    %150 = vmatpush1.msra.mxu0 %v85
    %151 = vmatprep.subr.mxu0 %v88
    %152 = vmatpush1.msra.mxu0 %v87
    %153 = vmatprep.subr.mxu0 %v90
    %154 = vmatpush1.msra.mxu0 %v89
    %155 = vmatprep.subr.mxu0 %v92
    %156 = vmatpush1.msra.mxu0 %v91
    %157 = vmatprep.subr.mxu0 %v94
    %158 = vmatpush1.msra.mxu0 %v93
    %159 = vmatprep.subr.mxu0 %v96
    %160 = vmatpush1.msra.mxu0 %v95
    %161 = vmatprep.subr.mxu0 %v98
    %162 = vmatpush1.msra.mxu0 %v97
    %163 = vmatprep.subr.mxu0 %v100
    %164 = vmatpush1.msra.mxu0 %v99
    %165 = vmatprep.subr.mxu0 %v102
    %166 = vmatpush1.msra.mxu0 %v101
    %167 = vmatprep.subr.mxu0 %v104
    %168 = vmatpush1.msra.mxu0 %v103
    %169 = vmatprep.subr.mxu0 %v106
    %170 = vmatpush1.msra.mxu0 %v105
    %171 = vmatprep.subr.mxu0 %v108
    %172 = vmatpush1.msra.mxu0 %v107
    %173 = vmatprep.subr.mxu0 %v110
    %174 = vmatpush1.msra.mxu0 %v109
    %175 = vmatprep.subr.mxu0 %v112
    %176 = vmatpush1.msra.mxu0 %v111
    %177 = vmatprep.subr.mxu0 %v114
    %178 = vmatpush1.msra.mxu0 %v113
    %179 = vmatprep.subr.mxu0 %v116
    %180 = vmatpush1.msra.mxu0 %v115
    %181 = vmatprep.subr.mxu0 %v118
    %182 = vmatpush1.msra.mxu0 %v117
    %183 = vmatprep.subr.mxu0 %v120
    %184 = vmatpush1.msra.mxu0 %v119
    %185 = vmatprep.subr.mxu0 %v122
    %186 = vmatpush1.msra.mxu0 %v121
    %187 = vmatprep.subr.mxu0 %v124
    %188 = vmatpush1.msra.mxu0 %v123
    %189 = vmatprep.subr.mxu0 %v126
    %190 = vmatpush1.msra.mxu0 %v125
    %191 = vmatprep.subr.mxu0 %v128
    %192 = vmatpush1.msra.mxu0 %v127
    %193 = vmatprep.subr.mxu0 %v130
    %194 = vmatpush1.msra.mxu0 %v129
    %195 = vmatprep.subr.mxu0 %v132
    %196 = vmatpush1.msra.mxu0 %v131
    %197 = vmatprep.subr.mxu0 %v134
    %198 = vmatpush1.msra.mxu0 %v133
    %199 = vmatprep.subr.mxu0 %v136
    %200 = vmatpush1.msra.mxu0 %v135
    %201 = vmatprep.subr.mxu0 %v138
    %202 = vmatpush1.msra.mxu0 %v137
    %203 = vmatprep.mubr.f32.mxu0 %v72
    %204 = vmatmul.mubr.f32.gmra.mrb[0].mxu0 %v71
    %v205 = vpop.f32.mrb[0].mxu0
    %v206 = vadd.f32 0.0, %v205
    %v207 = vpop.f32.mrb[0].mxu0
    %v208 = vadd.f32 0.0, %v207
    %209 = vmatprep.mubr.f32.mxu0 %v74
    %210 = vmatmul.mubr.f32.gmra.mrb[0].mxu0 %v73
    %v211 = vpop.f32.mrb[0].mxu0
    %v212 = vadd.f32 0.0, %v211
    %v213 = vpop.f32.mrb[0].mxu0
    %v214 = vadd.f32 0.0, %v213
    %215 = vdwg.mxu0
    %v216 = vld [vmem:[%s0] sm:$0xff]
    %v217 = vld [vmem:[%s0 + $0x8] sm:$0xff]
    %v218 = vld [vmem:[%s0 + $0x10] sm:$0xff]
    %v219 = vld [vmem:[%s0 + $0x18] sm:$0xff]
    %v220 = vmul.f32 %v216, %v206
    %v221 = vmul.f32 %v217, %v208
    %v222 = vmul.f32 %v218, %v212
    %v223 = vmul.f32 %v219, %v214
    %v224 = vld [vmem:[%s4] sm:$0xff]
    %v225 = vld [vmem:[%s4 + $0x8] sm:$0xff]
    %v226 = vld [vmem:[%s4 + $0x10] sm:$0xff]
    %v227 = vld [vmem:[%s4 + $0x18] sm:$0xff]
    %v228 = vld [vmem:[%s4 + $0x20] sm:$0xff]
    %v229 = vld [vmem:[%s4 + $0x28] sm:$0xff]
    %v230 = vld [vmem:[%s4 + $0x30] sm:$0xff]
    %v231 = vld [vmem:[%s4 + $0x38] sm:$0xff]
    %v232 = vld [vmem:[%s4 + $0x40] sm:$0xff]
    %v233 = vld [vmem:[%s4 + $0x48] sm:$0xff]
    %v234 = vld [vmem:[%s4 + $0x50] sm:$0xff]
    %v235 = vld [vmem:[%s4 + $0x58] sm:$0xff]
    %v236 = vld [vmem:[%s4 + $0x60] sm:$0xff]
    %v237 = vld [vmem:[%s4 + $0x68] sm:$0xff]
    %v238 = vld [vmem:[%s4 + $0x70] sm:$0xff]
    %v239 = vld [vmem:[%s4 + $0x78] sm:$0xff]
    %v240 = vld [vmem:[%s4 + $0x80] sm:$0xff]
    %v241 = vld [vmem:[%s4 + $0x88] sm:$0xff]
    %v242 = vld [vmem:[%s4 + $0x90] sm:$0xff]
    %v243 = vld [vmem:[%s4 + $0x98] sm:$0xff]
    %v244 = vld [vmem:[%s4 + $0xa0] sm:$0xff]
    %v245 = vld [vmem:[%s4 + $0xa8] sm:$0xff]
    %v246 = vld [vmem:[%s4 + $0xb0] sm:$0xff]
    %v247 = vld [vmem:[%s4 + $0xb8] sm:$0xff]
    %v248 = vld [vmem:[%s4 + $0xc0] sm:$0xff]
    %v249 = vld [vmem:[%s4 + $0xc8] sm:$0xff]
    %v250 = vld [vmem:[%s4 + $0xd0] sm:$0xff]
    %v251 = vld [vmem:[%s4 + $0xd8] sm:$0xff]
    %v252 = vld [vmem:[%s4 + $0xe0] sm:$0xff]
    %v253 = vld [vmem:[%s4 + $0xe8] sm:$0xff]
    %v254 = vld [vmem:[%s4 + $0xf0] sm:$0xff]
    %v255 = vld [vmem:[%s4 + $0xf8] sm:$0xff]
    %256 = vmatprep.subr.mxu0 0.0
    %257 = vmatpush1.msra.mxu0 %v224
    %258 = vmatprep.subr.mxu0 0.0
    %259 = vmatpush1.msra.mxu0 %v225
    %260 = vmatprep.subr.mxu0 0.0
    %261 = vmatpush1.msra.mxu0 %v226
    %262 = vmatprep.subr.mxu0 0.0
    %263 = vmatpush1.msra.mxu0 %v227
    %264 = vmatprep.subr.mxu0 0.0
    %265 = vmatpush1.msra.mxu0 %v228
    %266 = vmatprep.subr.mxu0 0.0
    %267 = vmatpush1.msra.mxu0 %v229
    %268 = vmatprep.subr.mxu0 0.0
    %269 = vmatpush1.msra.mxu0 %v230
    %270 = vmatprep.subr.mxu0 0.0
    %271 = vmatpush1.msra.mxu0 %v231
    %272 = vmatprep.subr.mxu0 0.0
    %273 = vmatpush1.msra.mxu0 %v232
    %274 = vmatprep.subr.mxu0 0.0
    %275 = vmatpush1.msra.mxu0 %v233
    %276 = vmatprep.subr.mxu0 0.0
    %277 = vmatpush1.msra.mxu0 %v234
    %278 = vmatprep.subr.mxu0 0.0
    %279 = vmatpush1.msra.mxu0 %v235
    %280 = vmatprep.subr.mxu0 0.0
    %281 = vmatpush1.msra.mxu0 %v236
    %282 = vmatprep.subr.mxu0 0.0
    %283 = vmatpush1.msra.mxu0 %v237
    %284 = vmatprep.subr.mxu0 0.0
    %285 = vmatpush1.msra.mxu0 %v238
    %286 = vmatprep.subr.mxu0 0.0
    %287 = vmatpush1.msra.mxu0 %v239
    %288 = vmatprep.subr.mxu0 0.0
    %289 = vmatpush1.msra.mxu0 %v240
    %290 = vmatprep.subr.mxu0 0.0
    %291 = vmatpush1.msra.mxu0 %v241
    %292 = vmatprep.subr.mxu0 0.0
    %293 = vmatpush1.msra.mxu0 %v242
    %294 = vmatprep.subr.mxu0 0.0
    %295 = vmatpush1.msra.mxu0 %v243
    %296 = vmatprep.subr.mxu0 0.0
    %297 = vmatpush1.msra.mxu0 %v244
    %298 = vmatprep.subr.mxu0 0.0
    %299 = vmatpush1.msra.mxu0 %v245
    %300 = vmatprep.subr.mxu0 0.0
    %301 = vmatpush1.msra.mxu0 %v246
    %302 = vmatprep.subr.mxu0 0.0
    %303 = vmatpush1.msra.mxu0 %v247
    %304 = vmatprep.subr.mxu0 0.0
    %305 = vmatpush1.msra.mxu0 %v248
    %306 = vmatprep.subr.mxu0 0.0
    %307 = vmatpush1.msra.mxu0 %v249
    %308 = vmatprep.subr.mxu0 0.0
    %309 = vmatpush1.msra.mxu0 %v250
    %310 = vmatprep.subr.mxu0 0.0
    %311 = vmatpush1.msra.mxu0 %v251
    %312 = vmatprep.subr.mxu0 0.0
    %313 = vmatpush1.msra.mxu0 %v252
    %314 = vmatprep.subr.mxu0 0.0
    %315 = vmatpush1.msra.mxu0 %v253
    %316 = vmatprep.subr.mxu0 0.0
    %317 = vmatpush1.msra.mxu0 %v254
    %318 = vmatprep.subr.mxu0 0.0
    %319 = vmatpush1.msra.mxu0 %v255
    %320 = vmatprep.mubr.f32.mxu0 %v221
    %321 = vmatmul.mubr.f32.gmra.mrb[0].mxu0 %v220
    %v322 = vpop.f32.mrb[0].mxu0
    %v323 = vadd.f32 0.0, %v322
    %v324 = vpop.f32.mrb[0].mxu0
    %325 = vmatprep.mubr.f32.mxu0 %v223
    %326 = vmatmul.mubr.f32.gmra.mrb[0].mxu0 %v222
    %v327 = vpop.f32.mrb[0].mxu0
    %v328 = vadd.f32 0.0, %v327
    %v329 = vpop.f32.mrb[0].mxu0
    %330 = vdwg.mxu0
    %v331 = vld [vmem:[#allocation7] sm:$0xff]
    %v332 = vld [vmem:[#allocation7 + $0x8] sm:$0xff]
    %v333 = vld [vmem:[#allocation7 + $0x10] sm:$0xff]
    %v334 = vld [vmem:[#allocation7 + $0x18] sm:$0xff]
    %v335 = vld [vmem:[#allocation7 + $0x20] sm:$0xff]
    %v336 = vld [vmem:[#allocation7 + $0x28] sm:$0xff]
    %v337 = vld [vmem:[#allocation7 + $0x30] sm:$0xff]
    %v338 = vld [vmem:[#allocation7 + $0x38] sm:$0xff]
    %vm339 = vcmask 130048
    %v341 = vsel %vm339, %v323, 0
    %v344 = vsel %vm339, %v328, 0
    %346 = vmatprep.subr.mxu0 %v332
    %347 = vmatpush1.msra.mxu0 %v331
    %348 = vmatprep.subr.mxu0 %v336
    %349 = vmatpush1.msra.mxu0 %v335
    %350 = vmatprep.subr.mxu0 0.0
    %351 = vmatpush1.msra.mxu0 0.0
    %352 = vmatprep.subr.mxu0 0.0
    %353 = vmatpush1.msra.mxu0 0.0
    %354 = vmatprep.subr.mxu0 0.0
    %355 = vmatpush1.msra.mxu0 0.0
    %356 = vmatprep.subr.mxu0 0.0
    %357 = vmatpush1.msra.mxu0 0.0
    %358 = vmatprep.subr.mxu0 0.0
    %359 = vmatpush1.msra.mxu0 0.0
    %360 = vmatprep.subr.mxu0 0.0
    %361 = vmatpush1.msra.mxu0 0.0
    %362 = vmatprep.subr.mxu0 0.0
    %363 = vmatpush1.msra.mxu0 0.0
    %364 = vmatprep.subr.mxu0 0.0
    %365 = vmatpush1.msra.mxu0 0.0
    %366 = vmatprep.subr.mxu0 0.0
    %367 = vmatpush1.msra.mxu0 0.0
    %368 = vmatprep.subr.mxu0 0.0
    %369 = vmatpush1.msra.mxu0 0.0
    %370 = vmatprep.subr.mxu0 0.0
    %371 = vmatpush1.msra.mxu0 0.0
    %372 = vmatprep.subr.mxu0 0.0
    %373 = vmatpush1.msra.mxu0 0.0
    %374 = vmatprep.subr.mxu0 0.0
    %375 = vmatpush1.msra.mxu0 0.0
    %376 = vmatprep.subr.mxu0 0.0
    %377 = vmatpush1.msra.mxu0 0.0
    %378 = vmatprep.subr.mxu0 0.0
    %379 = vmatpush1.msra.mxu0 0.0
    %380 = vmatprep.subr.mxu0 0.0
    %381 = vmatpush1.msra.mxu0 0.0
    %382 = vmatprep.subr.mxu0 0.0
    %383 = vmatpush1.msra.mxu0 0.0
    %384 = vmatprep.subr.mxu0 0.0
    %385 = vmatpush1.msra.mxu0 0.0
    %386 = vmatprep.subr.mxu0 0.0
    %387 = vmatpush1.msra.mxu0 0.0
    %388 = vmatprep.subr.mxu0 0.0
    %389 = vmatpush1.msra.mxu0 0.0
    %390 = vmatprep.subr.mxu0 0.0
    %391 = vmatpush1.msra.mxu0 0.0
    %392 = vmatprep.subr.mxu0 0.0
    %393 = vmatpush1.msra.mxu0 0.0
    %394 = vmatprep.subr.mxu0 0.0
    %395 = vmatpush1.msra.mxu0 0.0
    %396 = vmatprep.subr.mxu0 0.0
    %397 = vmatpush1.msra.mxu0 0.0
    %398 = vmatprep.subr.mxu0 0.0
    %399 = vmatpush1.msra.mxu0 0.0
    %400 = vmatprep.subr.mxu0 0.0
    %401 = vmatpush1.msra.mxu0 0.0
    %402 = vmatprep.subr.mxu0 0.0
    %403 = vmatpush1.msra.mxu0 0.0
    %404 = vmatprep.subr.mxu0 0.0
    %405 = vmatpush1.msra.mxu0 0.0
    %406 = vmatprep.subr.mxu0 0.0
    %407 = vmatpush1.msra.mxu0 0.0
    %408 = vmatprep.subr.mxu0 0.0
    %409 = vmatpush1.msra.mxu0 0.0
    %410 = vmatprep.mubr.f32.mxu0 0.0
    %411 = vmatmul.mubr.f32.gmra.mrb[0].mxu0 %v341
    %v412 = vpop.f32.mrb[0].mxu0
    %v413 = vadd.f32 1.0, %v412
    %v414 = vpop.f32.mrb[0].mxu0
    %v415 = vadd.f32 1.0, %v414
    %416 = vmatprep.mubr.f32.mxu0 0.0
    %417 = vmatmul.mubr.f32.gmra.mrb[0].mxu0 %v344
    %v418 = vpop.f32.mrb[0].mxu0
    %v419 = vadd.f32 1.0, %v418
    %v420 = vpop.f32.mrb[0].mxu0
    %v421 = vadd.f32 1.0, %v420
    %422 = vdwg.mxu0
    %423 = vmatprep.subr.mxu0 %v334
    %424 = vmatpush1.msra.mxu0 %v333
    %425 = vmatprep.subr.mxu0 %v338
    %426 = vmatpush1.msra.mxu0 %v337
    %427 = vmatprep.subr.mxu0 0.0
    %428 = vmatpush1.msra.mxu0 0.0
    %429 = vmatprep.subr.mxu0 0.0
    %430 = vmatpush1.msra.mxu0 0.0
    %431 = vmatprep.subr.mxu0 0.0
    %432 = vmatpush1.msra.mxu0 0.0
    %433 = vmatprep.subr.mxu0 0.0
    %434 = vmatpush1.msra.mxu0 0.0
    %435 = vmatprep.subr.mxu0 0.0
    %436 = vmatpush1.msra.mxu0 0.0
    %437 = vmatprep.subr.mxu0 0.0
    %438 = vmatpush1.msra.mxu0 0.0
    %439 = vmatprep.subr.mxu0 0.0
    %440 = vmatpush1.msra.mxu0 0.0
    %441 = vmatprep.subr.mxu0 0.0
    %442 = vmatpush1.msra.mxu0 0.0
    %443 = vmatprep.subr.mxu0 0.0
    %444 = vmatpush1.msra.mxu0 0.0
    %445 = vmatprep.subr.mxu0 0.0
    %446 = vmatpush1.msra.mxu0 0.0
    %447 = vmatprep.subr.mxu0 0.0
    %448 = vmatpush1.msra.mxu0 0.0
    %449 = vmatprep.subr.mxu0 0.0
    %450 = vmatpush1.msra.mxu0 0.0
    %451 = vmatprep.subr.mxu0 0.0
    %452 = vmatpush1.msra.mxu0 0.0
    %453 = vmatprep.subr.mxu0 0.0
    %454 = vmatpush1.msra.mxu0 0.0
    %455 = vmatprep.subr.mxu0 0.0
    %456 = vmatpush1.msra.mxu0 0.0
    %457 = vmatprep.subr.mxu0 0.0
    %458 = vmatpush1.msra.mxu0 0.0
    %459 = vmatprep.subr.mxu0 0.0
    %460 = vmatpush1.msra.mxu0 0.0
    %461 = vmatprep.subr.mxu0 0.0
    %462 = vmatpush1.msra.mxu0 0.0
    %463 = vmatprep.subr.mxu0 0.0
    %464 = vmatpush1.msra.mxu0 0.0
    %465 = vmatprep.subr.mxu0 0.0
    %466 = vmatpush1.msra.mxu0 0.0
    %467 = vmatprep.subr.mxu0 0.0
    %468 = vmatpush1.msra.mxu0 0.0
    %469 = vmatprep.subr.mxu0 0.0
    %470 = vmatpush1.msra.mxu0 0.0
    %471 = vmatprep.subr.mxu0 0.0
    %472 = vmatpush1.msra.mxu0 0.0
    %473 = vmatprep.subr.mxu0 0.0
    %474 = vmatpush1.msra.mxu0 0.0
    %475 = vmatprep.subr.mxu0 0.0
    %476 = vmatpush1.msra.mxu0 0.0
    %477 = vmatprep.subr.mxu0 0.0
    %478 = vmatpush1.msra.mxu0 0.0
    %479 = vmatprep.subr.mxu0 0.0
    %480 = vmatpush1.msra.mxu0 0.0
    %481 = vmatprep.subr.mxu0 0.0
    %482 = vmatpush1.msra.mxu0 0.0
    %483 = vmatprep.subr.mxu0 0.0
    %484 = vmatpush1.msra.mxu0 0.0
    %485 = vmatprep.subr.mxu0 0.0
    %486 = vmatpush1.msra.mxu0 0.0
    %487 = vmatprep.mubr.f32.mxu0 0.0
    %488 = vmatmul.mubr.f32.gmra.mrb[0].mxu0 %v341
    %v489 = vpop.f32.mrb[0].mxu0
    %v490 = vadd.f32 1.0, %v489
    %v491 = vpop.f32.mrb[0].mxu0
    %v492 = vadd.f32 1.0, %v491
    %493 = vmatprep.mubr.f32.mxu0 0.0
    %494 = vmatmul.mubr.f32.gmra.mrb[0].mxu0 %v344
    %v495 = vpop.f32.mrb[0].mxu0
    %v496 = vadd.f32 1.0, %v495
    %v497 = vpop.f32.mrb[0].mxu0
    %v498 = vadd.f32 1.0, %v497
    %499 = vdwg.mxu0
    %v500 = vld [vmem:[%s2] sm:$0xff]
    %v501 = vld [vmem:[%s2 + $0x8] sm:$0xff]
    %v502 = vld [vmem:[%s6] sm:$0xff]
    %v503 = vld [vmem:[%s6 + $0x8] sm:$0xff]
    %v504 = vld [vmem:[%s6 + $0x10] sm:$0xff]
    %v505 = vld [vmem:[%s6 + $0x18] sm:$0xff]
    %v506 = vld [vmem:[%s6 + $0x20] sm:$0xff]
    %v507 = vld [vmem:[%s6 + $0x28] sm:$0xff]
    %v508 = vld [vmem:[%s6 + $0x30] sm:$0xff]
    %v509 = vld [vmem:[%s6 + $0x38] sm:$0xff]
    %v510 = vld [vmem:[%s6 + $0x40] sm:$0xff]
    %v511 = vld [vmem:[%s6 + $0x48] sm:$0xff]
    %v512 = vld [vmem:[%s6 + $0x50] sm:$0xff]
    %v513 = vld [vmem:[%s6 + $0x58] sm:$0xff]
    %v514 = vld [vmem:[%s6 + $0x60] sm:$0xff]
    %v515 = vld [vmem:[%s6 + $0x68] sm:$0xff]
    %v516 = vld [vmem:[%s6 + $0x70] sm:$0xff]
    %v517 = vld [vmem:[%s6 + $0x78] sm:$0xff]
    %v518 = vld [vmem:[%s6 + $0x80] sm:$0xff]
    %v519 = vld [vmem:[%s6 + $0x88] sm:$0xff]
    %v520 = vld [vmem:[%s6 + $0x90] sm:$0xff]
    %v521 = vld [vmem:[%s6 + $0x98] sm:$0xff]
    %v522 = vld [vmem:[%s6 + $0xa0] sm:$0xff]
    %v523 = vld [vmem:[%s6 + $0xa8] sm:$0xff]
    %v524 = vld [vmem:[%s6 + $0xb0] sm:$0xff]
    %v525 = vld [vmem:[%s6 + $0xb8] sm:$0xff]
    %v526 = vld [vmem:[%s6 + $0xc0] sm:$0xff]
    %v527 = vld [vmem:[%s6 + $0xc8] sm:$0xff]
    %v528 = vld [vmem:[%s6 + $0xd0] sm:$0xff]
    %v529 = vld [vmem:[%s6 + $0xd8] sm:$0xff]
    %v530 = vld [vmem:[%s6 + $0xe0] sm:$0xff]
    %v531 = vld [vmem:[%s6 + $0xe8] sm:$0xff]
    %v532 = vld [vmem:[%s6 + $0xf0] sm:$0xff]
    %v533 = vld [vmem:[%s6 + $0xf8] sm:$0xff]
    %v534 = vld [vmem:[%s7] sm:$0xf]
    %v536 = vlaneseq
    %v537 = vshrl.u32 %v536, 7
    %v538 = vsub.s32 0, %v537
    %v539 = vrot.slane %v534, %v538
    %v540 = vlaneseq
    %v541 = vshrl.u32 %v540, 7
    %v542 = vsub.s32 1, %v541
    %v543 = vrot.slane %v534, %v542
    %v544 = vlaneseq
    %v545 = vshrl.u32 %v544, 7
    %v546 = vsub.s32 2, %v545
    %v547 = vrot.slane %v534, %v546
    %v548 = vlaneseq
    %v549 = vshrl.u32 %v548, 7
    %v550 = vsub.s32 3, %v549
    %v551 = vrot.slane %v534, %v550
    %vm556 = vcmask 523264
    %v558 = vsel %vm556, %v500, 0
    %v561 = vsel %vm556, %v501, 0
    %563 = vmatprep.subr.mxu0 %v503
    %564 = vmatpush1.msra.mxu0 %v502
    %565 = vmatprep.subr.mxu0 %v507
    %566 = vmatpush1.msra.mxu0 %v506
    %567 = vmatprep.subr.mxu0 %v511
    %568 = vmatpush1.msra.mxu0 %v510
    %569 = vmatprep.subr.mxu0 %v515
    %570 = vmatpush1.msra.mxu0 %v514
    %571 = vmatprep.subr.mxu0 %v519
    %572 = vmatpush1.msra.mxu0 %v518
    %573 = vmatprep.subr.mxu0 %v523
    %574 = vmatpush1.msra.mxu0 %v522
    %575 = vmatprep.subr.mxu0 %v527
    %576 = vmatpush1.msra.mxu0 %v526
    %577 = vmatprep.subr.mxu0 %v531
    %578 = vmatpush1.msra.mxu0 %v530
    %579 = vmatprep.subr.mxu0 0.0
    %580 = vmatpush1.msra.mxu0 0.0
    %581 = vmatprep.subr.mxu0 0.0
    %582 = vmatpush1.msra.mxu0 0.0
    %583 = vmatprep.subr.mxu0 0.0
    %584 = vmatpush1.msra.mxu0 0.0
    %585 = vmatprep.subr.mxu0 0.0
    %586 = vmatpush1.msra.mxu0 0.0
    %587 = vmatprep.subr.mxu0 0.0
    %588 = vmatpush1.msra.mxu0 0.0
    %589 = vmatprep.subr.mxu0 0.0
    %590 = vmatpush1.msra.mxu0 0.0
    %591 = vmatprep.subr.mxu0 0.0
    %592 = vmatpush1.msra.mxu0 0.0
    %593 = vmatprep.subr.mxu0 0.0
    %594 = vmatpush1.msra.mxu0 0.0
    %595 = vmatprep.subr.mxu0 0.0
    %596 = vmatpush1.msra.mxu0 0.0
    %597 = vmatprep.subr.mxu0 0.0
    %598 = vmatpush1.msra.mxu0 0.0
    %599 = vmatprep.subr.mxu0 0.0
    %600 = vmatpush1.msra.mxu0 0.0
    %601 = vmatprep.subr.mxu0 0.0
    %602 = vmatpush1.msra.mxu0 0.0
    %603 = vmatprep.subr.mxu0 0.0
    %604 = vmatpush1.msra.mxu0 0.0
    %605 = vmatprep.subr.mxu0 0.0
    %606 = vmatpush1.msra.mxu0 0.0
    %607 = vmatprep.subr.mxu0 0.0
    %608 = vmatpush1.msra.mxu0 0.0
    %609 = vmatprep.subr.mxu0 0.0
    %610 = vmatpush1.msra.mxu0 0.0
    %611 = vmatprep.subr.mxu0 0.0
    %612 = vmatpush1.msra.mxu0 0.0
    %613 = vmatprep.subr.mxu0 0.0
    %614 = vmatpush1.msra.mxu0 0.0
    %615 = vmatprep.subr.mxu0 0.0
    %616 = vmatpush1.msra.mxu0 0.0
    %617 = vmatprep.subr.mxu0 0.0
    %618 = vmatpush1.msra.mxu0 0.0
    %619 = vmatprep.subr.mxu0 0.0
    %620 = vmatpush1.msra.mxu0 0.0
    %621 = vmatprep.subr.mxu0 0.0
    %622 = vmatpush1.msra.mxu0 0.0
    %623 = vmatprep.subr.mxu0 0.0
    %624 = vmatpush1.msra.mxu0 0.0
    %625 = vmatprep.subr.mxu0 0.0
    %626 = vmatpush1.msra.mxu0 0.0
    %627 = vmatprep.mubr.f32.mxu0 0.0
    %628 = vmatmul.mubr.f32.gmra.mrb[0].mxu0 %v558
    %v629 = vpop.f32.mrb[0].mxu0
    %v630 = vadd.f32 %v539, %v629
    %v631 = vpop.f32.mrb[0].mxu0
    %v632 = vadd.f32 %v543, %v631
    %633 = vmatprep.mubr.f32.mxu0 0.0
    %634 = vmatmul.mubr.f32.gmra.mrb[0].mxu0 %v561
    %v635 = vpop.f32.mrb[0].mxu0
    %v636 = vadd.f32 %v539, %v635
    %v637 = vpop.f32.mrb[0].mxu0
    %v638 = vadd.f32 %v543, %v637
    %639 = vdwg.mxu0
    %640 = vmatprep.subr.mxu0 %v505
    %641 = vmatpush1.msra.mxu0 %v504
    %642 = vmatprep.subr.mxu0 %v509
    %643 = vmatpush1.msra.mxu0 %v508
    %644 = vmatprep.subr.mxu0 %v513
    %645 = vmatpush1.msra.mxu0 %v512
    %646 = vmatprep.subr.mxu0 %v517
    %647 = vmatpush1.msra.mxu0 %v516
    %648 = vmatprep.subr.mxu0 %v521
    %649 = vmatpush1.msra.mxu0 %v520
    %650 = vmatprep.subr.mxu0 %v525
    %651 = vmatpush1.msra.mxu0 %v524
    %652 = vmatprep.subr.mxu0 %v529
    %653 = vmatpush1.msra.mxu0 %v528
    %654 = vmatprep.subr.mxu0 %v533
    %655 = vmatpush1.msra.mxu0 %v532
    %656 = vmatprep.subr.mxu0 0.0
    %657 = vmatpush1.msra.mxu0 0.0
    %658 = vmatprep.subr.mxu0 0.0
    %659 = vmatpush1.msra.mxu0 0.0
    %660 = vmatprep.subr.mxu0 0.0
    %661 = vmatpush1.msra.mxu0 0.0
    %662 = vmatprep.subr.mxu0 0.0
    %663 = vmatpush1.msra.mxu0 0.0
    %664 = vmatprep.subr.mxu0 0.0
    %665 = vmatpush1.msra.mxu0 0.0
    %666 = vmatprep.subr.mxu0 0.0
    %667 = vmatpush1.msra.mxu0 0.0
    %668 = vmatprep.subr.mxu0 0.0
    %669 = vmatpush1.msra.mxu0 0.0
    %670 = vmatprep.subr.mxu0 0.0
    %671 = vmatpush1.msra.mxu0 0.0
    %672 = vmatprep.subr.mxu0 0.0
    %673 = vmatpush1.msra.mxu0 0.0
    %674 = vmatprep.subr.mxu0 0.0
    %675 = vmatpush1.msra.mxu0 0.0
    %676 = vmatprep.subr.mxu0 0.0
    %677 = vmatpush1.msra.mxu0 0.0
    %678 = vmatprep.subr.mxu0 0.0
    %679 = vmatpush1.msra.mxu0 0.0
    %680 = vmatprep.subr.mxu0 0.0
    %681 = vmatpush1.msra.mxu0 0.0
    %682 = vmatprep.subr.mxu0 0.0
    %683 = vmatpush1.msra.mxu0 0.0
    %684 = vmatprep.subr.mxu0 0.0
    %685 = vmatpush1.msra.mxu0 0.0
    %686 = vmatprep.subr.mxu0 0.0
    %687 = vmatpush1.msra.mxu0 0.0
    %688 = vmatprep.subr.mxu0 0.0
    %689 = vmatpush1.msra.mxu0 0.0
    %690 = vmatprep.subr.mxu0 0.0
    %691 = vmatpush1.msra.mxu0 0.0
    %692 = vmatprep.subr.mxu0 0.0
    %693 = vmatpush1.msra.mxu0 0.0
    %694 = vmatprep.subr.mxu0 0.0
    %695 = vmatpush1.msra.mxu0 0.0
    %696 = vmatprep.subr.mxu0 0.0
    %697 = vmatpush1.msra.mxu0 0.0
    %698 = vmatprep.subr.mxu0 0.0
    %699 = vmatpush1.msra.mxu0 0.0
    %700 = vmatprep.subr.mxu0 0.0
    %701 = vmatpush1.msra.mxu0 0.0
    %702 = vmatprep.subr.mxu0 0.0
    %703 = vmatpush1.msra.mxu0 0.0
    %704 = vmatprep.mubr.f32.mxu0 0.0
    %705 = vmatmul.mubr.f32.gmra.mrb[0].mxu0 %v558
    %v706 = vpop.f32.mrb[0].mxu0
    %v707 = vadd.f32 %v547, %v706
    %v708 = vpop.f32.mrb[0].mxu0
    %v709 = vadd.f32 %v551, %v708
    %710 = vmatprep.mubr.f32.mxu0 0.0
    %711 = vmatmul.mubr.f32.gmra.mrb[0].mxu0 %v561
    %v712 = vpop.f32.mrb[0].mxu0
    %v713 = vadd.f32 %v547, %v712
    %v714 = vpop.f32.mrb[0].mxu0
    %v715 = vadd.f32 %v551, %v714
    %716 = vdwg.mxu0
    %v717 = vmul.f32 %v413, %v630
    %v718 = vmul.f32 %v415, %v632
    %v719 = vmul.f32 %v490, %v707
    %v720 = vmul.f32 %v492, %v709
    %v721 = vmul.f32 %v419, %v636
    %v722 = vmul.f32 %v421, %v638
    %v723 = vmul.f32 %v496, %v713
    %v724 = vmul.f32 %v498, %v715
    %725 = vst [vmem:[#allocation8] sm:$0xff] %v717
    %726 = vst [vmem:[#allocation8 + $0x8] sm:$0xff] %v718
    %727 = vst [vmem:[#allocation8 + $0x10] sm:$0xff] %v719
    %728 = vst [vmem:[#allocation8 + $0x18] sm:$0xff] %v720
    %729 = vst [vmem:[#allocation8 + $0x20] sm:$0xff] %v721
    %730 = vst [vmem:[#allocation8 + $0x28] sm:$0xff] %v722
    %731 = vst [vmem:[#allocation8 + $0x30] sm:$0xff] %v723
    %732 = vst [vmem:[#allocation8 + $0x38] sm:$0xff] %v724
    // Predicated region
    $region46: #{tpu_custom_call.1} parent=1 // pred_check
      _
    $region47: #{tpu_custom_call.1} parent=1 // pred_check_branch
      %734 = sbr.rel (0) target = $region49
    $region48: #{tpu_custom_call.1} parent=1 // pred_region
      %s736 = ssub.s32 1024, 1024
      %737 = vsyncadd [#allocation4], %s736
      %s738 = sshll.u32 [#allocation8], 4
      %s739 = int_to_ptr.vmem [resolvable:$true] %s738
      %744 = dma.vmem_to_hbm [thread:$0]  %s739, 1024, %s8, [#allocation4], 512, 512, 32
    $region49: #{tpu_custom_call.1} parent=1 // pred_fallthru
      _
    // Predicated region
    $region50: #{tpu_custom_call.1} parent=1 // pred_check
      _
    $region51: #{tpu_custom_call.1} parent=1 // pred_check_branch
      %746 = sbr.rel (0) target = $region53
    $region52: #{tpu_custom_call.1} parent=1 // pred_region
      %747 = dma.done [#allocation4], 1024
    $region53: #{tpu_custom_call.1} parent=1 // pred_fallthru
      _
    %748 = vsyncpa [#allocation3], 1
    %749 = vsyncpa [#allocation6], 1
    %750 = vsyncpa [#allocation4], 1

</llo_original>
